<compile_context>
chip_gen: v5e
topology: v5e:2x2
jax: 0.10.0
libtpu: 0.0.40
codegen_flags: <defaults>
</compile_context>

<pallas_src>
import jax
import jax.numpy as jnp
from jax import lax
from jax.experimental import pallas as pl
from jax.experimental.pallas import tpu as pltpu


def _uniform_policy_kernel(seed_ref, out_ref):
    """Fill out_ref with uniform(-1, 1) float32 using a counter-based hash."""
    tile_rows, lanes = out_ref.shape
    pid = pl.program_id(0)

    # Global flat element index of every element in this tile.
    row = lax.broadcasted_iota(jnp.int32, (tile_rows, lanes), 0)
    lane = lax.broadcasted_iota(jnp.int32, (tile_rows, lanes), 1)
    idx = (pid * tile_rows + row) * lanes + lane

    # Mix the seed in, then apply the lowbias32 finalizer (good 32-bit mixer).
    x = idx.astype(jnp.uint32) + seed_ref[0].astype(jnp.uint32) * jnp.uint32(0x9E3779B9)
    x = x ^ (x >> jnp.uint32(16))
    x = x * jnp.uint32(0x7FEB352D)
    x = x ^ (x >> jnp.uint32(15))
    x = x * jnp.uint32(0x846CA68B)
    x = x ^ (x >> jnp.uint32(16))

    # Mantissa trick fused with the *2 - 1 affine map:
    #   top 23 random bits as mantissa, exponent bits 0x40000000 -> [2, 4);
    #   subtract 3.0 -> uniform in [-1, 1).
    mant = (x >> jnp.uint32(9)) | jnp.uint32(0x40000000)
    out_ref[...] = lax.bitcast_convert_type(mant, jnp.float32) - jnp.float32(3.0)


def uniform_policy_forward(states, dim_action, seed=0):
    """JAX/Pallas equivalent of the uniform-actor forward.

    Args:
      states: array of shape [..., state_dim]; values are ignored (only the
        leading batch dims define the output shape), matching the PyTorch module.
      dim_action: action dimensionality.
      seed: int seed; pass a fresh value per call for new random actions.

    Returns:
      float32 array of shape states.shape[:-1] + (dim_action,), uniform in [-1, 1).
    """
    batch_shape = states.shape[:-1]
    n = 1
    for d in batch_shape:
        n *= int(d)
    n = max(n, 1)
    total = n * dim_action

    # Lane-dense flat slab: last dim a multiple of 128 (1024 for larger sizes).
    lanes = 1024 if total >= 1024 * 8 else 128
    rows = -(-total // lanes)                       # cdiv
    tile_rows = min(512, ((rows + 7) // 8) * 8)     # multiple of 8 sublanes
    rows_padded = ((rows + tile_rows - 1) // tile_rows) * tile_rows
    num_tiles = rows_padded // tile_rows

    seed_arr = jnp.asarray([seed], dtype=jnp.int32)

    out_slab = pl.pallas_call(
        _uniform_policy_kernel,
        out_shape=jax.ShapeDtypeStruct((rows_padded, lanes), jnp.float32),
        grid=(num_tiles,),
        in_specs=[pl.BlockSpec(memory_space=pltpu.MemorySpace.SMEM)],
        out_specs=pl.BlockSpec((tile_rows, lanes), lambda i: (i, 0)),
        compiler_params=pltpu.CompilerParams(
            dimension_semantics=("parallel",),
        ),
        cost_estimate=pl.CostEstimate(
            flops=10 * rows_padded * lanes,
            transcendentals=0,
            bytes_accessed=rows_padded * lanes * 4,
        ),
    )(seed_arr)

    flat = out_slab.reshape(-1)[:total]
    return flat.reshape(batch_shape + (dim_action,))


if __name__ == "__main__":
    key = jax.random.PRNGKey(0)
    batch, state_dim, dim_action = 8, 32, 16

    # Deterministic example "states" (values unused by the policy, as in torch).
    states = jax.random.normal(key, (batch, state_dim), dtype=jnp.float32)

    actions = uniform_policy_forward(states, dim_action, seed=0)
    actions = jax.block_until_ready(actions)

    # Sanity checks: shape, dtype, and range semantics of torch.rand * 2 - 1.
    assert actions.shape == (batch, dim_action), actions.shape
    assert actions.dtype == jnp.float32, actions.dtype
    assert bool(jnp.all(actions >= -1.0)) and bool(jnp.all(actions < 1.0))
    # Not a degenerate constant output.
    assert bool(jnp.max(actions) > jnp.min(actions))

    print("KERNEL_OK")
</pallas_src>

<mosaic_0001>
module attributes {stable_mosaic.version = 11 : i64} {
  func.func @_uniform_policy_kernel(%arg0: i32, %arg1: memref<1xi32, #tpu.memory_space<smem>>, %arg2: memref<8x128xf32, #tpu.memory_space<vmem>>) attributes {dimension_semantics = [#tpu.dimension_semantics<parallel>], iteration_bounds = array<i64: 1>, scalar_prefetch = 0 : i64, scratch_operands = 0 : i64, tpu.core_type = #tpu.core_type<tc>, window_params = [{transform_indices = @transform_0, window_bounds = array<i64: 1>}, {transform_indices = @transform_1, window_bounds = array<i64: 8, 128>}]} {
    %0 = tpu.iota {dimensions = array<i32: 0>} : vector<8x128xi32>
    %1 = tpu.iota {dimensions = array<i32: 1>} : vector<8x128xi32>
    %c8_i32 = arith.constant 8 : i32
    %2 = arith.muli %arg0, %c8_i32 : i32
    %3 = vector.broadcast %2 : i32 to vector<8x128xi32>
    %4 = arith.addi %3, %0 : vector<8x128xi32>
    %c128_i32 = arith.constant 128 : i32
    %5 = vector.broadcast %c128_i32 : i32 to vector<8x128xi32>
    %6 = arith.muli %4, %5 : vector<8x128xi32>
    %7 = arith.addi %6, %1 : vector<8x128xi32>
    %c0 = arith.constant 0 : index
    %8 = memref.load %arg1[%c0] : memref<1xi32, #tpu.memory_space<smem>>
    %c-1640531527_i32 = arith.constant -1640531527 : i32
    %9 = arith.muli %8, %c-1640531527_i32 : i32
    %10 = vector.broadcast %9 : i32 to vector<8x128xi32>
    %11 = arith.addi %7, %10 : vector<8x128xi32>
    %c16_i32 = arith.constant 16 : i32
    %12 = vector.broadcast %c16_i32 : i32 to vector<8x128xi32>
    %13 = arith.shrui %11, %12 : vector<8x128xi32>
    %14 = arith.xori %11, %13 : vector<8x128xi32>
    %c2146121005_i32 = arith.constant 2146121005 : i32
    %15 = vector.broadcast %c2146121005_i32 : i32 to vector<8x128xi32>
    %16 = arith.muli %14, %15 : vector<8x128xi32>
    %c15_i32 = arith.constant 15 : i32
    %17 = vector.broadcast %c15_i32 : i32 to vector<8x128xi32>
    %18 = arith.shrui %16, %17 : vector<8x128xi32>
    %19 = arith.xori %16, %18 : vector<8x128xi32>
    %c-2073254261_i32 = arith.constant -2073254261 : i32
    %20 = vector.broadcast %c-2073254261_i32 : i32 to vector<8x128xi32>
    %21 = arith.muli %19, %20 : vector<8x128xi32>
    %c16_i32_0 = arith.constant 16 : i32
    %22 = vector.broadcast %c16_i32_0 : i32 to vector<8x128xi32>
    %23 = arith.shrui %21, %22 : vector<8x128xi32>
    %24 = arith.xori %21, %23 : vector<8x128xi32>
    %c9_i32 = arith.constant 9 : i32
    %25 = vector.broadcast %c9_i32 : i32 to vector<8x128xi32>
    %26 = arith.shrui %24, %25 : vector<8x128xi32>
    %c1073741824_i32 = arith.constant 1073741824 : i32
    %27 = vector.broadcast %c1073741824_i32 : i32 to vector<8x128xi32>
    %28 = arith.ori %26, %27 : vector<8x128xi32>
    %29 = tpu.bitcast %28 : vector<8x128xi32> -> vector<8x128xf32>
    %cst = arith.constant 3.000000e+00 : f32
    %30 = vector.broadcast %cst : f32 to vector<8x128xf32>
    %31 = arith.subf %29, %30 : vector<8x128xf32>
    %c0_1 = arith.constant 0 : index
    %c0_2 = arith.constant 0 : index
    %32 = vector.load %arg2[%c0_1, %c0_2] : memref<8x128xf32, #tpu.memory_space<vmem>>, vector<8x128xf32>
    tpu.vector_store %arg2[%c0_1, %c0_2], %31 {strides = array<i32>} : memref<8x128xf32, #tpu.memory_space<vmem>>, vector<8x128xf32>,
    return
  }
  func.func @transform_0(%arg0: i32) -> i32 {
    %c0_i32 = arith.constant 0 : i32
    %c0_i32_0 = arith.constant 0 : i32
    return %c0_i32 : i32
  }
  func.func @transform_1(%arg0: i32) -> (i32, i32) {
    %c0_i32 = arith.constant 0 : i32
    %c0_i32_0 = arith.constant 0 : i32
    return %arg0, %c0_i32 : i32, i32
  }
}

</mosaic_0001>

<llo_original>
// kernel: tpu_custom_call.1
$region0: #{tpu_custom_call.1}
  #allocation0 [shape = 'u32[]', space=smem, size = 0x4, offset = 0x4, fixed_abs, tag = 'smem constant byte address 0x4 - core index']
  #allocation1 [shape = 'u32[72,128]{1,0:T(1,128)}', space=vmem, size = 0x9000, scoped, tag = 'internal scratch']
  #allocation2 [shape = 's32[1]{0:T(128)S(6)}', space=smem, size = 0x200, scoped, tag = 'scoped memory for tpu_custom_call.1']
  %s0 = inlined_call_operand.<no memory space> [shape: s32[1], index: 0, kind: input, shape index: {}]
  %s1 = inlined_call_operand.hbm [shape: f32[8,128], index: 1, kind: output, shape index: {}]
  %s2 = sld [smem:[#allocation0]]
  $region14: #{tpu_custom_call.1} parent=0
    _
  %s4 = ssub.s32 1, %s2
  %s5 = scalar_select 0, %s4, %s2
  %6 = sst [smem:[#allocation2]] %s0
  $region1: #{tpu_custom_call.1} parent=0
    #allocation3 [shape = 'u8[4096]{0}', space=vmem, size = 0x1000, scoped, tag = 'output window, operand 0, single buffered']
    #allocation4 [shape = 's32[1]{0}', space=sflag, size = 0x4, scoped, tag = 'scoped memory for tpu_custom_call.1']
    %7 = vsyncpa [#allocation4], 0
    // Predicated region
    $region2: #{tpu_custom_call.1} parent=1 // pred_check
      _
    $region3: #{tpu_custom_call.1} parent=1 // pred_check_branch
      %9 = sbr.rel (0) target = $region5
    $region4: #{tpu_custom_call.1} parent=1 // pred_region
      _
    $region5: #{tpu_custom_call.1} parent=1 // pred_fallthru
      _
    %v10 = vlaneseq
    %v11 = vshrl.u32 %v10, 7
    %v12 = vlaneseq
    %v13 = vand.u32 %v12, 127
    %s14 = smul.u32 0, 8
    %v15 = vstv %s14
    %v16 = vadd.s32 %v15, %v11
    %v17 = vmul.u32 %v16, 128
    %v18 = vadd.s32 %v17, %v13
    %s19 = sld [smem:[#allocation2]]
    %s20 = smul.u32 %s19, 2654435769
    %v21 = vstv %s20
    %v22 = vadd.s32 %v18, %v21
    %v23 = vshrl.u32 %v22, 16
    %v24 = vxor.u32 %v22, %v23
    %v25 = vmul.u32 %v24, 2146121005
    %v26 = vshrl.u32 %v25, 15
    %v27 = vxor.u32 %v25, %v26
    %v28 = vmul.u32 %v27, 2221713035
    %v29 = vshrl.u32 %v28, 16
    %v30 = vxor.u32 %v28, %v29
    %v31 = vshrl.u32 %v30, 9
    %v32 = vor.u32 %v31, 1073741824
    %v34 = vsub.f32 %v32, 3.0
    %35 = vst [vmem:[#allocation3] sm:$0xff] %v34
    // Predicated region
    $region6: #{tpu_custom_call.1} parent=1 // pred_check
      _
    $region7: #{tpu_custom_call.1} parent=1 // pred_check_branch
      %37 = sbr.rel (0) target = $region9
    $region8: #{tpu_custom_call.1} parent=1 // pred_region
      %39 = vsyncadd [#allocation4], 0
      %s41 = sshll.u32 [#allocation3], 4
      %s42 = int_to_ptr.vmem [resolvable:$true] %s41
      %s43 = sshll.u32 %s1, 4
      %s44 = int_to_ptr.hbm [resolvable:$true] %s43
      %46 = dma.vmem_to_hbm [thread:$0]  %s42, 128, %s44, [#allocation4]
    $region9: #{tpu_custom_call.1} parent=1 // pred_fallthru
      _
    // Predicated region
    $region10: #{tpu_custom_call.1} parent=1 // pred_check
      _
    $region11: #{tpu_custom_call.1} parent=1 // pred_check_branch
      %48 = sbr.rel (0) target = $region13
    $region12: #{tpu_custom_call.1} parent=1 // pred_region
      %50 = dma.done [#allocation4], 128
    $region13: #{tpu_custom_call.1} parent=1 // pred_fallthru
      _
    %51 = vsyncpa [#allocation4], 1

</llo_original>
